<compile_context>
chip_gen: v7x
topology: tpu7x:2x2x1
jax: 0.10.0
libtpu: 0.0.40
codegen_flags: <defaults>
</compile_context>

<pallas_src>
import jax
import jax.numpy as jnp
from jax.experimental import pallas as pl
from jax.experimental.pallas import tpu as pltpu


def _round_up(x: int, m: int) -> int:
    return (x + m - 1) // m * m


def _cdiv(a: int, b: int) -> int:
    return (a + b - 1) // b


def _tpu_vmem_bytes() -> int:
    """Physical VMEM capacity (per TensorCore), with a conservative fallback."""
    try:
        return int(pltpu.get_tpu_info().vmem_capacity_bytes)
    except Exception:
        return 64 << 20  # v7x-sized conservative default


# --------------------------------------------------------------------------- #
# Kernels
# --------------------------------------------------------------------------- #
def _textcond_resident_kernel(x_ref, w_ref, b_ref, null_ref, mask_ref, o_ref):
    """Weight-resident path: one dot per M-block, weight DMA'd once.

    x_ref:    (tm, Dp) bf16   flattened token-embedding tile
    w_ref:    (Dp, Ep) bf16   FULL Linear weight (block index constant -> resident)
    b_ref:    (1,  Ep) f32    bias
    null_ref: (1,  Ep) f32    null_text_embedding
    mask_ref: (tm, 1)  f32    per-row CFG keep mask (1.0 keep / 0.0 drop)
    o_ref:    (tm, Ep) bf16   output tile
    """
    y = jnp.dot(x_ref[...], w_ref[...],
                preferred_element_type=jnp.float32) + b_ref[...]
    keep = mask_ref[...] != 0.0                       # (tm, 1) broadcast
    # Select in f32, cast once (v5e has no bf16 VPU path).
    o_ref[...] = jnp.where(keep, y, null_ref[...]).astype(o_ref.dtype)


def _textcond_tiled_kernel(x_ref, w_ref, b_ref, null_ref, mask_ref, o_ref,
                           acc_ref):
    """K/N-tiled fallback for weights too large to keep VMEM-resident.

    x_ref:    (tm, tk) bf16
    w_ref:    (tk, tn) bf16
    b_ref:    (1,  tn) f32
    null_ref: (1,  tn) f32
    mask_ref: (tm, 1)  f32
    o_ref:    (tm, tn) bf16
    acc_ref:  (tm, tn) f32 scratch, persists across the K grid axis
    """
    k = pl.program_id(2)

    @pl.when(k == 0)
    def _():
        # Initialise the accumulator with the broadcast bias (saves the
        # epilogue add).
        acc_ref[...] = jnp.broadcast_to(b_ref[...], acc_ref.shape)

    acc_ref[...] += jnp.dot(x_ref[...], w_ref[...],
                            preferred_element_type=jnp.float32)

    @pl.when(k == pl.num_programs(2) - 1)
    def _():
        keep = mask_ref[...] != 0.0
        o_ref[...] = jnp.where(keep, acc_ref[...],
                               null_ref[...]).astype(o_ref.dtype)


# --------------------------------------------------------------------------- #
# Builder / wrapper
# --------------------------------------------------------------------------- #
def build_textcond_forward(weight, bias, null_embed, fwd_dtype=jnp.bfloat16, *,
                           force_tiled=False, max_tile_n=None, max_tile_k=None):
    """Prepare the TextCond projection parameters ONCE and return a jitted
    forward(text_embedding, keep_mask) -> (B, T, E) in fwd_dtype.

    weight:     (D_enc, E) f32 -- torch Linear weight, already transposed
    bias:       (E,)       f32
    null_embed: (E,)       f32 -- null_text_embedding
    """
    weight = jnp.asarray(weight, jnp.float32)
    bias = jnp.asarray(bias, jnp.float32)
    null_embed = jnp.asarray(null_embed, jnp.float32)
    D, E = weight.shape
    itemsize = jnp.dtype(fwd_dtype).itemsize

    vmem_cap = _tpu_vmem_bytes()

    # ---- path + tile selection (static, based on D/E and this chip's VMEM) --
    Dp128 = D if D < 128 else _round_up(D, 128)
    Ep128 = E if E < 128 else _round_up(E, 128)
    weight_budget = max(8 << 20, vmem_cap // 4)   # ~16 MiB on v7x, ~32 MiB v5e/v6e
    resident = (not force_tiled) and (Dp128 * Ep128 * itemsize <= weight_budget)

    if vmem_cap >= (96 << 20):      # v5e / v6e: 128 MiB VMEM -> bigger tiles
        tn_cap, tk_cap = 512, 1024
    else:                           # v7x: 64 MiB VMEM -> conservative tiles
        tn_cap, tk_cap = 256, 512
    if max_tile_n is not None:
        tn_cap = max_tile_n
    if max_tile_k is not None:
        tk_cap = max_tile_k

    if resident:
        Dp, Ep = Dp128, Ep128
        tn, tk = Ep, Dp            # unused by the resident kernel, kept for info
        TM_MAX = 256
    else:
        tn = Ep128 if E < 128 else min(tn_cap, Ep128)
        tk = Dp128 if D < 128 else min(tk_cap, Dp128)
        Ep = E if E < 128 else _round_up(E, tn)
        Dp = D if D < 128 else _round_up(D, tk)
        TM_MAX = 512

    # ---- one-time parameter prep (NOT inside the jitted forward) ------------
    w_p = jnp.pad(weight.astype(fwd_dtype), ((0, Dp - D), (0, Ep - E)))
    b_p = jnp.pad(bias, (0, Ep - E)).reshape(1, Ep)
    null_p = jnp.pad(null_embed, (0, Ep - E)).reshape(1, Ep)

    def forward(text_embedding, keep_mask, w_p, b_p, null_p):
        B, T, D_in = text_embedding.shape
        assert D_in == D, (D_in, D)
        M = B * T

        # tm: multiple of 16 (bf16 sublane packing); keep >= 2 M-blocks when
        # possible so the 'parallel' axis can shard across v7x's 2 TensorCores.
        if M <= 16:
            tm = _round_up(M, 16)
        else:
            tm = min(TM_MAX, _round_up(_cdiv(M, 2), 16))
        Mp = _round_up(M, tm)

        x_p = jnp.pad(text_embedding.reshape(M, D), ((0, Mp - M), (0, Dp - D)))
        row_keep = jnp.broadcast_to(
            keep_mask.astype(jnp.float32).reshape(B, 1), (B, T)).reshape(M, 1)
        mask_p = jnp.pad(row_keep, ((0, Mp - M), (0, 0)))

        if resident:
            need = (Dp * Ep * itemsize            # resident weight
                    + 2 * tm * Dp * itemsize      # double-buffered x tile
                    + 2 * tm * Ep * itemsize      # double-buffered out tile
                    + 4 * Ep * 4 + 4 * tm * 4)    # bias/null/mask
            vmem_limit = int(min(vmem_cap * 3 // 4,
                                 max(32 << 20, 2 * need)))
            out_p = pl.pallas_call(
                _textcond_resident_kernel,
                out_shape=jax.ShapeDtypeStruct((Mp, Ep), fwd_dtype),
                grid=(Mp // tm,),
                in_specs=[
                    pl.BlockSpec((tm, Dp), lambda i: (i, 0)),   # x tile
                    pl.BlockSpec((Dp, Ep), lambda i: (0, 0)),   # weight, resident
                    pl.BlockSpec((1, Ep), lambda i: (0, 0)),    # bias
                    pl.BlockSpec((1, Ep), lambda i: (0, 0)),    # null embedding
                    pl.BlockSpec((tm, 1), lambda i: (i, 0)),    # keep mask
                ],
                out_specs=pl.BlockSpec((tm, Ep), lambda i: (i, 0)),
                compiler_params=pltpu.CompilerParams(
                    dimension_semantics=("parallel",),
                    vmem_limit_bytes=vmem_limit),
            )(x_p, w_p, b_p, null_p, mask_p)
        else:
            need = (2 * tm * tk * itemsize + 2 * tk * tn * itemsize
                    + 2 * tm * tn * itemsize + tm * tn * 4
                    + 4 * tn * 4 + 4 * tm * 4)
            vmem_limit = int(min(vmem_cap * 3 // 4,
                                 max(32 << 20, 2 * need)))
            grid = (Mp // tm, Ep // tn, Dp // tk)
            out_p = pl.pallas_call(
                _textcond_tiled_kernel,
                out_shape=jax.ShapeDtypeStruct((Mp, Ep), fwd_dtype),
                grid=grid,
                in_specs=[
                    pl.BlockSpec((tm, tk), lambda i, j, k: (i, k)),
                    pl.BlockSpec((tk, tn), lambda i, j, k: (k, j)),
                    pl.BlockSpec((1, tn), lambda i, j, k: (0, j)),
                    pl.BlockSpec((1, tn), lambda i, j, k: (0, j)),
                    pl.BlockSpec((tm, 1), lambda i, j, k: (i, 0)),
                ],
                out_specs=pl.BlockSpec((tm, tn), lambda i, j, k: (i, j)),
                scratch_shapes=[pltpu.VMEM((tm, tn), jnp.float32)],
                compiler_params=pltpu.CompilerParams(
                    dimension_semantics=("parallel", "parallel", "arbitrary"),
                    vmem_limit_bytes=vmem_limit),
            )(x_p, w_p, b_p, null_p, mask_p)

        return out_p[:M, :E].reshape(B, T, E)

    fwd = jax.jit(forward)
    return lambda text_embedding, keep_mask: fwd(text_embedding, keep_mask,
                                                 w_p, b_p, null_p)


# --------------------------------------------------------------------------- #
# Reference (plain JAX, mirrors the autocast-bf16 Linear + CFG drop)
# --------------------------------------------------------------------------- #
def _reference(text_embedding, weight, bias, null_embed, keep_mask, fwd_dtype):
    y = (jnp.einsum("btd,de->bte", text_embedding, weight.astype(fwd_dtype),
                    preferred_element_type=jnp.float32) + bias).astype(fwd_dtype)
    null_bc = jnp.broadcast_to(null_embed.astype(fwd_dtype), y.shape)
    return jnp.where(keep_mask[:, None, None] != 0, y, null_bc)


if __name__ == "__main__":
    FWD_DTYPE = jnp.bfloat16
    key = jax.random.PRNGKey(0)

    # ---- config 1: small module-consistent shapes (weight-resident path) ----
    B, T, D_ENC, EMBED_DIM = 2, 8, 32, 32
    CFG_DROP_PROB = 0.5

    k_txt, k_w, k_b, k_null, k_keep, key = jax.random.split(key, 6)
    text_embedding = jax.random.normal(
        k_txt, (B, T, D_ENC), dtype=jnp.float32).astype(FWD_DTYPE)
    lim = 1.0 / (D_ENC ** 0.5)
    weight = jax.random.uniform(k_w, (D_ENC, EMBED_DIM), jnp.float32, -lim, lim)
    bias = jax.random.uniform(k_b, (EMBED_DIM,), jnp.float32, -lim, lim)
    null_embed = jax.random.normal(
        k_null, (EMBED_DIM,), jnp.float32) / (EMBED_DIM ** 0.5)
    keep_mask = (jax.random.uniform(k_keep, (B,)) > CFG_DROP_PROB).astype(jnp.int32)

    fwd = build_textcond_forward(weight, bias, null_embed, FWD_DTYPE)
    out = jax.block_until_ready(fwd(text_embedding, keep_mask))
    assert out.shape == (B, T, EMBED_DIM) and out.dtype == FWD_DTYPE
    expected = _reference(text_embedding, weight, bias, null_embed,
                          keep_mask, FWD_DTYPE)
    assert jnp.allclose(out.astype(jnp.float32), expected.astype(jnp.float32),
                        atol=2e-2, rtol=2e-2)

    # ---- config 2: force the K/N-tiled fallback (multi-block 3D grid) -------
    B2, T2, D2, E2 = 2, 64, 384, 256
    k_txt, k_w, k_b, k_null, k_keep, key = jax.random.split(key, 6)
    te2 = jax.random.normal(k_txt, (B2, T2, D2), jnp.float32).astype(FWD_DTYPE)
    lim2 = 1.0 / (D2 ** 0.5)
    w2 = jax.random.uniform(k_w, (D2, E2), jnp.float32, -lim2, lim2)
    b2 = jax.random.uniform(k_b, (E2,), jnp.float32, -lim2, lim2)
    n2 = jax.random.normal(k_null, (E2,), jnp.float32) / (E2 ** 0.5)
    km2 = (jax.random.uniform(k_keep, (B2,)) > 0.5).astype(jnp.int32)

    fwd2 = build_textcond_forward(w2, b2, n2, FWD_DTYPE, force_tiled=True,
                                  max_tile_n=128, max_tile_k=128)
    out2 = jax.block_until_ready(fwd2(te2, km2))
    assert out2.shape == (B2, T2, E2) and out2.dtype == FWD_DTYPE
    expected2 = _reference(te2, w2, b2, n2, km2, FWD_DTYPE)
    assert jnp.allclose(out2.astype(jnp.float32), expected2.astype(jnp.float32),
                        atol=2e-2, rtol=2e-2)

    print("KERNEL_OK")
</pallas_src>

<mosaic_0001>
module attributes {stable_mosaic.version = 11 : i64} {
  func.func @_textcond_resident_kernel(%arg0: i32, %arg1: memref<16x32xbf16, #tpu.memory_space<vmem>>, %arg2: memref<32x32xbf16, #tpu.memory_space<vmem>>, %arg3: memref<1x32xf32, #tpu.memory_space<vmem>>, %arg4: memref<1x32xf32, #tpu.memory_space<vmem>>, %arg5: memref<16x1xf32, #tpu.memory_space<vmem>>, %arg6: memref<16x32xbf16, #tpu.memory_space<vmem>>) attributes {dimension_semantics = [#tpu.dimension_semantics<parallel>], iteration_bounds = array<i64: 1>, scalar_prefetch = 0 : i64, scratch_operands = 0 : i64, tpu.core_type = #tpu.core_type<tc>, window_params = [{transform_indices = @transform_0, window_bounds = array<i64: 16, 32>}, {pipeline_mode = #tpu.pipeline_mode<synchronous>, transform_indices = @transform_1, window_bounds = array<i64: 32, 32>}, {pipeline_mode = #tpu.pipeline_mode<synchronous>, transform_indices = @transform_2, window_bounds = array<i64: 1, 32>}, {pipeline_mode = #tpu.pipeline_mode<synchronous>, transform_indices = @transform_3, window_bounds = array<i64: 1, 32>}, {transform_indices = @transform_4, window_bounds = array<i64: 16, 1>}, {transform_indices = @transform_5, window_bounds = array<i64: 16, 32>}]} {
    %c0 = arith.constant 0 : index
    %c0_0 = arith.constant 0 : index
    %0 = vector.load %arg1[%c0, %c0_0] : memref<16x32xbf16, #tpu.memory_space<vmem>>, vector<16x32xbf16>
    %c0_1 = arith.constant 0 : index
    %c0_2 = arith.constant 0 : index
    %1 = vector.load %arg2[%c0_1, %c0_2] : memref<32x32xbf16, #tpu.memory_space<vmem>>, vector<32x32xbf16>
    %cst = arith.constant dense<0.000000e+00> : vector<16x32xf32>
    %2 = tpu.matmul %0, %1, %cst {dimension_numbers = #tpu.dot_dimension_numbers<[1], [0], [0], [1], [0, 0, 1, 1], [], []>} : vector<16x32xbf16>, vector<32x32xbf16>, vector<16x32xf32> -> vector<16x32xf32>
    %c0_3 = arith.constant 0 : index
    %c0_4 = arith.constant 0 : index
    %3 = vector.load %arg3[%c0_3, %c0_4] : memref<1x32xf32, #tpu.memory_space<vmem>>, vector<1x32xf32>
    %4 = vector.broadcast %3 : vector<1x32xf32> to vector<16x32xf32>
    %5 = arith.addf %2, %4 : vector<16x32xf32>
    %c0_5 = arith.constant 0 : index
    %c0_6 = arith.constant 0 : index
    %6 = vector.load %arg5[%c0_5, %c0_6] : memref<16x1xf32, #tpu.memory_space<vmem>>, vector<16x1xf32>
    %cst_7 = arith.constant 0.000000e+00 : f32
    %7 = vector.broadcast %cst_7 : f32 to vector<16x1xf32>
    %8 = arith.cmpf one, %6, %7 : vector<16x1xf32>
    %c0_8 = arith.constant 0 : index
    %c0_9 = arith.constant 0 : index
    %9 = vector.load %arg4[%c0_8, %c0_9] : memref<1x32xf32, #tpu.memory_space<vmem>>, vector<1x32xf32>
    %10 = vector.shape_cast %8 : vector<16x1xi1> to vector<16x1xi1>
    %11 = vector.broadcast %10 : vector<16x1xi1> to vector<16x32xi1>
    %12 = vector.shape_cast %9 : vector<1x32xf32> to vector<1x32xf32>
    %13 = vector.broadcast %12 : vector<1x32xf32> to vector<16x32xf32>
    %14 = arith.select %11, %5, %13 : vector<16x32xi1>, vector<16x32xf32>
    %15 = arith.truncf %14 : vector<16x32xf32> to vector<16x32xbf16>
    %c0_10 = arith.constant 0 : index
    %c0_11 = arith.constant 0 : index
    %16 = vector.load %arg6[%c0_10, %c0_11] : memref<16x32xbf16, #tpu.memory_space<vmem>>, vector<16x32xbf16>
    tpu.vector_store %arg6[%c0_10, %c0_11], %15 {strides = array<i32>} : memref<16x32xbf16, #tpu.memory_space<vmem>>, vector<16x32xbf16>,
    return
  }
  func.func @transform_0(%arg0: i32) -> (i32, i32) {
    %c0_i32 = arith.constant 0 : i32
    %c0_i32_0 = arith.constant 0 : i32
    return %arg0, %c0_i32 : i32, i32
  }
  func.func @transform_1(%arg0: i32) -> (i32, i32) {
    %c0_i32 = arith.constant 0 : i32
    %c0_i32_0 = arith.constant 0 : i32
    %c0_i32_1 = arith.constant 0 : i32
    return %c0_i32, %c0_i32_0 : i32, i32
  }
  func.func @transform_2(%arg0: i32) -> (i32, i32) {
    %c0_i32 = arith.constant 0 : i32
    %c0_i32_0 = arith.constant 0 : i32
    %c0_i32_1 = arith.constant 0 : i32
    return %c0_i32, %c0_i32_0 : i32, i32
  }
  func.func @transform_3(%arg0: i32) -> (i32, i32) {
    %c0_i32 = arith.constant 0 : i32
    %c0_i32_0 = arith.constant 0 : i32
    %c0_i32_1 = arith.constant 0 : i32
    return %c0_i32, %c0_i32_0 : i32, i32
  }
  func.func @transform_4(%arg0: i32) -> (i32, i32) {
    %c0_i32 = arith.constant 0 : i32
    %c0_i32_0 = arith.constant 0 : i32
    return %arg0, %c0_i32 : i32, i32
  }
  func.func @transform_5(%arg0: i32) -> (i32, i32) {
    %c0_i32 = arith.constant 0 : i32
    %c0_i32_0 = arith.constant 0 : i32
    return %arg0, %c0_i32 : i32, i32
  }
}

</mosaic_0001>

<llo_original>
// kernel: forward.1
$region0: #{forward.1}
  #allocation0 [shape = 'u32[]', space=smem, size = 0x4, offset = 0x4, fixed_abs, tag = 'smem constant byte address 0x4 - core index']
  #allocation1 [shape = 'u32[144,128]{1,0:T(1,128)}', space=vmem, size = 0x12000, scoped, tag = 'internal scratch']
  %s0 = inlined_call_operand.vmem [shape: bf16[16,32], index: 0, kind: input, shape index: {}]
  %s1 = inlined_call_operand.vmem [shape: bf16[32,32], index: 1, kind: input, shape index: {}]
  %s2 = inlined_call_operand.vmem [shape: f32[1,32], index: 2, kind: input, shape index: {}]
  %s3 = inlined_call_operand.vmem [shape: f32[1,32], index: 3, kind: input, shape index: {}]
  %s4 = inlined_call_operand.vmem [shape: f32[16,1], index: 4, kind: input, shape index: {}]
  %s5 = inlined_call_operand.hbm [shape: bf16[16,32], index: 5, kind: output, shape index: {}]
  %s6 = sld [smem:[#allocation0]]
  $region30: #{forward.1} parent=0
    _
  %s8 = ssub.s32 1, %s6
  %s9 = scalar_select 0, %s8, %s6
  $region1: #{forward.1} parent=0
    #allocation2 [shape = 'u8[4096]{0}', space=vmem, size = 0x1000, scoped, tag = 'output window, operand 0, single buffered']
    #allocation3 [shape = 's32[1]{0}', space=sflag, size = 0x4, scoped, tag = 'scoped memory for forward.1']
    %10 = vsyncpa [#allocation3], 0
    // Predicated region
    $region2: #{forward.1} parent=1 // pred_check
      _
    $region3: #{forward.1} parent=1 // pred_check_branch
      %12 = sbr.rel (0) target = $region5
    $region4: #{forward.1} parent=1 // pred_region
      _
    $region5: #{forward.1} parent=1 // pred_fallthru
      _
    // Predicated region
    $region6: #{forward.1} parent=1 // pred_check
      _
    $region7: #{forward.1} parent=1 // pred_check_branch
      %14 = sbr.rel (0) target = $region9
    $region8: #{forward.1} parent=1 // pred_region
      _
    $region9: #{forward.1} parent=1 // pred_fallthru
      _
    // Predicated region
    $region10: #{forward.1} parent=1 // pred_check
      _
    $region11: #{forward.1} parent=1 // pred_check_branch
      %16 = sbr.rel (0) target = $region13
    $region12: #{forward.1} parent=1 // pred_region
      _
    $region13: #{forward.1} parent=1 // pred_fallthru
      _
    // Predicated region
    $region14: #{forward.1} parent=1 // pred_check
      _
    $region15: #{forward.1} parent=1 // pred_check_branch
      %18 = sbr.rel (0) target = $region17
    $region16: #{forward.1} parent=1 // pred_region
      _
    $region17: #{forward.1} parent=1 // pred_fallthru
      _
    // Predicated region
    $region18: #{forward.1} parent=1 // pred_check
      _
    $region19: #{forward.1} parent=1 // pred_check_branch
      %20 = sbr.rel (0) target = $region21
    $region20: #{forward.1} parent=1 // pred_region
      _
    $region21: #{forward.1} parent=1 // pred_fallthru
      _
    %v22 = vld [vmem:[%s0] sm:$0xf]
    %v23 = vld [vmem:[%s0 + $0x4] sm:$0xf]
    %v24 = vld [vmem:[%s1] sm:$0xf]
    %v25 = vld [vmem:[%s1 + $0x4] sm:$0xf]
    %v26 = vld [vmem:[%s1 + $0x8] sm:$0xf]
    %v27 = vld [vmem:[%s1 + $0xc] sm:$0xf]
    %v28 = vld [vmem:[%s2] sm:$0x1]
    %v30 = vlaneseq
    %v31 = vshrl.u32 %v30, 7
    %v32 = vsub.s32 0, %v31
    %v33 = vrot.slane %v28, %v32
    %v37 = vunpack.c.l.b16 %v22
    %v38 = vunpack.c.l.b16 %v23
    %v39 = vpack.c.b16 %v38, %v37
    %v44 = vunpack.c.l.b16 %v24
    %v45 = vunpack.c.l.b16 %v25
    %v46 = vunpack.c.l.b16 %v26
    %v47 = vunpack.c.l.b16 %v27
    %v48 = vpack.c.b16 %v45, %v44
    %v49 = vpack.c.b16 %v47, %v46
    %vm52 = vcmask 261120
    %v54 = vsel %vm52, %v39, 0
    %56 = vmatprep.subr.bf16.mxu0 0
    %57 = vmatpush1.bf16.msra.mxu0 %v48
    %58 = vmatprep.subr.bf16.mxu0 0
    %59 = vmatpush1.bf16.msra.mxu0 %v49
    %60 = vmatprep.subr.bf16.mxu0 0
    %61 = vmatpush1.bf16.msra.mxu0 0
    %62 = vmatprep.subr.bf16.mxu0 0
    %63 = vmatpush1.bf16.msra.mxu0 0
    %64 = vmatprep.subr.bf16.mxu0 0
    %65 = vmatpush1.bf16.msra.mxu0 0
    %66 = vmatprep.subr.bf16.mxu0 0
    %67 = vmatpush1.bf16.msra.mxu0 0
    %68 = vmatprep.subr.bf16.mxu0 0
    %69 = vmatpush1.bf16.msra.mxu0 0
    %70 = vmatprep.subr.bf16.mxu0 0
    %71 = vmatpush1.bf16.msra.mxu0 0
    %72 = vmatprep.subr.bf16.mxu0 0
    %73 = vmatpush1.bf16.msra.mxu0 0
    %74 = vmatprep.subr.bf16.mxu0 0
    %75 = vmatpush1.bf16.msra.mxu0 0
    %76 = vmatprep.subr.bf16.mxu0 0
    %77 = vmatpush1.bf16.msra.mxu0 0
    %78 = vmatprep.subr.bf16.mxu0 0
    %79 = vmatpush1.bf16.msra.mxu0 0
    %80 = vmatprep.subr.bf16.mxu0 0
    %81 = vmatpush1.bf16.msra.mxu0 0
    %82 = vmatprep.subr.bf16.mxu0 0
    %83 = vmatpush1.bf16.msra.mxu0 0
    %84 = vmatprep.subr.bf16.mxu0 0
    %85 = vmatpush1.bf16.msra.mxu0 0
    %86 = vmatprep.subr.bf16.mxu0 0
    %87 = vmatpush1.bf16.msra.mxu0 0
    %88 = vmatprep.mubr.bf16.mxu0 0
    %89 = vmatmul.mubr.bf16.gmra.mrb[0].mxu0 %v54
    %v90 = vpop.f32.mrb[0].mxu0
    %v91 = vadd.f32 %v33, %v90
    %v92 = vpop.f32.mrb[0].mxu0
    %v93 = vpop.f32.mrb[0].mxu0
    %v94 = vadd.f32 %v33, %v93
    %v95 = vpop.f32.mrb[0].mxu0
    %96 = vdwg.mxu0
    %v97 = vld [vmem:[%s4] sm:$0xff]
    %v98 = vld [vmem:[%s4 + $0x8] sm:$0xff]
    %vm99 = vcmp.ne.f32.partialorder %v97, 0.0
    %vm100 = vcmp.ne.f32.partialorder %v98, 0.0
    %v101 = vld [vmem:[%s3] sm:$0x1]
    %v102 = vsel %vm99, 1, 0
    %v103 = vsel %vm100, 1, 0
    %104 = vset.pattern.permute.xlu0 0
    %105 = vperm.xlu0 %104, %v102
    %v106 = vpop.permute.xlu0 %105
    %107 = vset.pattern.permute.xlu0 0
    %108 = vperm.xlu0 %107, %v103
    %v109 = vpop.permute.xlu0 %108
    %vm110 = vcmp.eq.s32.totalorder %v106, 1
    %vm111 = vcmp.eq.s32.totalorder %v109, 1
    %v113 = vlaneseq
    %v114 = vshrl.u32 %v113, 7
    %v115 = vsub.s32 0, %v114
    %v116 = vrot.slane %v101, %v115
    %v118 = vsel %vm110, %v91, %v116
    %v119 = vsel %vm111, %v94, %v116
    %v120 = vpack.c.bf16 %v119, %v118
    %v122 = vunpack.c.l.b16 %v120
    %v123 = vunpack.c.h.b16 %v120
    %v124 = vpack.c.b16 %v122, %v122
    %v125 = vpack.c.b16 %v123, %v123
    %vm128 = vcmask 257024
    %129 = vst.msk [vmem:[#allocation2] sm:$0xf] %vm128, %v124
    %130 = vst.msk [vmem:[#allocation2 + $0x4] sm:$0xf] %vm128, %v125
    // Predicated region
    $region22: #{forward.1} parent=1 // pred_check
      _
    $region23: #{forward.1} parent=1 // pred_check_branch
      %132 = sbr.rel (0) target = $region25
    $region24: #{forward.1} parent=1 // pred_region
      %s134 = ssub.s32 128, 128
      %135 = vsyncadd [#allocation3], %s134
      %s136 = sshll.u32 [#allocation2], 4
      %s137 = int_to_ptr.vmem [resolvable:$true] %s136
      %142 = dma.vmem_to_hbm [thread:$0]  %s137, 128, %s5, [#allocation3], 64, 64, 4
    $region25: #{forward.1} parent=1 // pred_fallthru
      _
    // Predicated region
    $region26: #{forward.1} parent=1 // pred_check
      _
    $region27: #{forward.1} parent=1 // pred_check_branch
      %144 = sbr.rel (0) target = $region29
    $region28: #{forward.1} parent=1 // pred_region
      %145 = dma.done [#allocation3], 128
    $region29: #{forward.1} parent=1 // pred_fallthru
      _
    %146 = vsyncpa [#allocation3], 1

</llo_original>
